<compile_context>
chip_gen: v5e
topology: v5e:2x2
jax: 0.10.0
libtpu: 0.0.40
codegen_flags: <defaults>
</compile_context>

<pallas_src>
import math

import jax
import jax.numpy as jnp
from jax.experimental import pallas as pl
from jax.experimental.pallas import tpu as pltpu


def _round_up(x, m):
    return ((x + m - 1) // m) * m


def _cdiv(a, b):
    return (a + b - 1) // b


def _dqn_kernel(x_ref, w1_ref, b1_ref, w2_ref, b2_ref, out_ref):
    # Hidden layer: x @ W1 (pre-transposed to (inputs, hidden_pad)) + b1, ReLU.
    h = jnp.dot(x_ref[...], w1_ref[...], preferred_element_type=jnp.float32)
    h = jnp.maximum(h + b1_ref[...], 0.0)            # (tb, hp); b1 broadcasts
    # Output layer: h @ W2 (pre-transposed to (hidden_pad, outputs)) + b2.
    # Result is already the narrow (tb, outputs) block -> no lane-padded
    # writeback and no wrapper slice.
    o = jnp.dot(h, w2_ref[...], preferred_element_type=jnp.float32)
    out_ref[...] = (o + b2_ref[...]).astype(out_ref.dtype)


def prepare_dqn_params(w1, b1, w2, b2):
    """One-time param packing (do at init / after each optimizer step).

    Takes PyTorch-layout params:
      w1: (hidden, inputs), b1: (hidden,), w2: (outputs, hidden), b2: (outputs,)
    Returns pre-transposed params with the hidden dim zero-padded to a
    multiple of 128 lanes (exact: padded weights/biases are 0, ReLU(0)=0, and
    the padded hidden rows of W2 are 0).  The output dim is left unpadded so
    the kernel writes a narrow (tb, outputs) block.
    """
    hidden, inputs = w1.shape
    outputs = w2.shape[0]
    hp = _round_up(hidden, 128)

    w1_t = jnp.zeros((inputs, hp), jnp.float32).at[:, :hidden].set(
        w1.T.astype(jnp.float32))
    b1_p = jnp.zeros((1, hp), jnp.float32).at[0, :hidden].set(
        b1.astype(jnp.float32))
    w2_t = jnp.zeros((hp, outputs), jnp.float32).at[:hidden, :].set(
        w2.T.astype(jnp.float32))
    b2_p = b2.astype(jnp.float32).reshape(1, outputs)
    return w1_t, b1_p, w2_t, b2_p


# Largest batch tile.  With the 4-lane-wide output a double-buffered 4096-row
# tile is < 1 MiB of VMEM, comfortably inside the default scoped VMEM on
# v5e (16 MiB) / v6e (32 MiB) / v7x (32 MiB) -- no vmem_limit_bytes needed.
_TB_MAX = 4096


@jax.jit
def dqn_forward(x, packed_params):
    """Forward pass. `packed_params` comes from `prepare_dqn_params`."""
    w1_t, b1_p, w2_t, b2_p = packed_params
    B, inputs = x.shape
    hp = w1_t.shape[1]
    outputs = w2_t.shape[1]

    if B <= _TB_MAX:
        # Single block: pad the batch only up to the 8-sublane granule.
        n_blocks = 1
        tb = _round_up(B, 8)
    else:
        # Multi-block: even block count so both v7x TensorCores get work
        # under dimension_semantics=("parallel",).
        n_blocks = _cdiv(B, _TB_MAX)
        n_blocks += n_blocks % 2
        tb = _round_up(_cdiv(B, n_blocks), 8)
    b_pad = n_blocks * tb

    x_p = x if b_pad == B else jnp.pad(x, ((0, b_pad - B), (0, 0)))

    cost = pl.CostEstimate(
        flops=2 * b_pad * (inputs * hp + hp * outputs),
        transcendentals=0,
        bytes_accessed=4 * (b_pad * inputs + inputs * hp + hp
                            + hp * outputs + outputs + b_pad * outputs),
    )

    out = pl.pallas_call(
        _dqn_kernel,
        out_shape=jax.ShapeDtypeStruct((b_pad, outputs), jnp.float32),
        grid=(n_blocks,),
        in_specs=[
            # x: tiled over the batch grid axis.
            pl.BlockSpec((tb, inputs), lambda i: (i, 0), memory_space=pltpu.VMEM),
            # Weights/biases: grid-invariant (resident across all steps).
            pl.BlockSpec((inputs, hp), lambda i: (0, 0), memory_space=pltpu.VMEM),
            pl.BlockSpec((1, hp), lambda i: (0, 0), memory_space=pltpu.VMEM),
            pl.BlockSpec((hp, outputs), lambda i: (0, 0), memory_space=pltpu.VMEM),
            pl.BlockSpec((1, outputs), lambda i: (0, 0), memory_space=pltpu.VMEM),
        ],
        out_specs=pl.BlockSpec((tb, outputs), lambda i: (i, 0),
                               memory_space=pltpu.VMEM),
        compiler_params=pltpu.CompilerParams(
            dimension_semantics=("parallel",)),
        cost_estimate=cost,
    )(x_p, w1_t, b1_p, w2_t, b2_p)

    return out if b_pad == B else out[:B]


def init_dqn_params(key, inputs, outputs, layer_params=100):
    """Deterministic init mimicking PyTorch nn.Linear default (uniform +/- 1/sqrt(fan_in))."""
    k1, k2, k3, k4 = jax.random.split(key, 4)
    bound1 = 1.0 / math.sqrt(inputs)
    bound2 = 1.0 / math.sqrt(layer_params)
    w1 = jax.random.uniform(k1, (layer_params, inputs), jnp.float32, -bound1, bound1)
    b1 = jax.random.uniform(k2, (layer_params,), jnp.float32, -bound1, bound1)
    w2 = jax.random.uniform(k3, (outputs, layer_params), jnp.float32, -bound2, bound2)
    b2 = jax.random.uniform(k4, (outputs,), jnp.float32, -bound2, bound2)
    return w1, b1, w2, b2


if __name__ == "__main__":
    key = jax.random.PRNGKey(0)
    k_x, k_p = jax.random.split(key)

    B, INPUTS, OUTPUTS, HIDDEN = 8, 16, 4, 100  # matches DQN(inputs=16, outputs=4)

    x = jax.random.normal(k_x, (B, INPUTS), jnp.float32)
    w1, b1, w2, b2 = init_dqn_params(k_p, INPUTS, OUTPUTS, HIDDEN)

    # One-time packing (hoisted out of the hot path).
    packed = prepare_dqn_params(w1, b1, w2, b2)

    out = jax.block_until_ready(dqn_forward(x, packed))

    # Reference check in plain JAX (same math as the PyTorch module).
    ref = jnp.maximum(x @ w1.T + b1, 0.0) @ w2.T + b2
    assert out.shape == (B, OUTPUTS)
    assert jnp.allclose(out, ref, atol=1e-5, rtol=1e-5)

    # Non-multiple-of-8 batch -> single large tile + row-pad path.
    x_mid = jax.random.normal(k_x, (517, INPUTS), jnp.float32)
    out_mid = jax.block_until_ready(dqn_forward(x_mid, packed))
    ref_mid = jnp.maximum(x_mid @ w1.T + b1, 0.0) @ w2.T + b2
    assert out_mid.shape == (517, OUTPUTS)
    assert jnp.allclose(out_mid, ref_mid, atol=1e-4, rtol=1e-5)

    # Batch above TB_MAX -> multi-block grid path (even n_blocks for v7x).
    x_big = jax.random.normal(k_x, (5003, INPUTS), jnp.float32)
    out_big = jax.block_until_ready(dqn_forward(x_big, packed))
    ref_big = jnp.maximum(x_big @ w1.T + b1, 0.0) @ w2.T + b2
    assert out_big.shape == (5003, OUTPUTS)
    assert jnp.allclose(out_big, ref_big, atol=1e-4, rtol=1e-5)

    print("KERNEL_OK")
</pallas_src>

<mosaic_0001>
module attributes {stable_mosaic.version = 11 : i64} {
  func.func @_dqn_kernel(%arg0: i32, %arg1: memref<8x16xf32, #tpu.memory_space<vmem>>, %arg2: memref<16x128xf32, #tpu.memory_space<vmem>>, %arg3: memref<1x128xf32, #tpu.memory_space<vmem>>, %arg4: memref<128x4xf32, #tpu.memory_space<vmem>>, %arg5: memref<1x4xf32, #tpu.memory_space<vmem>>, %arg6: memref<8x4xf32, #tpu.memory_space<vmem>>) attributes {dimension_semantics = [#tpu.dimension_semantics<parallel>], iteration_bounds = array<i64: 1>, scalar_prefetch = 0 : i64, scratch_operands = 0 : i64, tpu.core_type = #tpu.core_type<tc>, window_params = [{transform_indices = @transform_0, window_bounds = array<i64: 8, 16>}, {pipeline_mode = #tpu.pipeline_mode<synchronous>, transform_indices = @transform_1, window_bounds = array<i64: 16, 128>}, {pipeline_mode = #tpu.pipeline_mode<synchronous>, transform_indices = @transform_2, window_bounds = array<i64: 1, 128>}, {pipeline_mode = #tpu.pipeline_mode<synchronous>, transform_indices = @transform_3, window_bounds = array<i64: 128, 4>}, {pipeline_mode = #tpu.pipeline_mode<synchronous>, transform_indices = @transform_4, window_bounds = array<i64: 1, 4>}, {transform_indices = @transform_5, window_bounds = array<i64: 8, 4>}]} {
    %c0 = arith.constant 0 : index
    %c0_0 = arith.constant 0 : index
    %0 = vector.load %arg1[%c0, %c0_0] : memref<8x16xf32, #tpu.memory_space<vmem>>, vector<8x16xf32>
    %c0_1 = arith.constant 0 : index
    %c0_2 = arith.constant 0 : index
    %1 = vector.load %arg2[%c0_1, %c0_2] : memref<16x128xf32, #tpu.memory_space<vmem>>, vector<16x128xf32>
    %cst = arith.constant dense<0.000000e+00> : vector<8x128xf32>
    %2 = tpu.matmul %0, %1, %cst {dimension_numbers = #tpu.dot_dimension_numbers<[1], [0], [0], [1], [0, 0, 1, 1], [], []>} : vector<8x16xf32>, vector<16x128xf32>, vector<8x128xf32> -> vector<8x128xf32>
    %c0_3 = arith.constant 0 : index
    %c0_4 = arith.constant 0 : index
    %3 = vector.load %arg3[%c0_3, %c0_4] : memref<1x128xf32, #tpu.memory_space<vmem>>, vector<1x128xf32>
    %4 = vector.broadcast %3 : vector<1x128xf32> to vector<8x128xf32>
    %5 = arith.addf %2, %4 : vector<8x128xf32>
    %cst_5 = arith.constant 0.000000e+00 : f32
    %6 = vector.broadcast %cst_5 : f32 to vector<8x128xf32>
    %7 = arith.maximumf %5, %6 : vector<8x128xf32>
    %c0_6 = arith.constant 0 : index
    %c0_7 = arith.constant 0 : index
    %8 = vector.load %arg4[%c0_6, %c0_7] : memref<128x4xf32, #tpu.memory_space<vmem>>, vector<128x4xf32>
    %cst_8 = arith.constant dense<0.000000e+00> : vector<8x4xf32>
    %9 = tpu.matmul %7, %8, %cst_8 {dimension_numbers = #tpu.dot_dimension_numbers<[1], [0], [0], [1], [0, 0, 1, 1], [], []>} : vector<8x128xf32>, vector<128x4xf32>, vector<8x4xf32> -> vector<8x4xf32>
    %c0_9 = arith.constant 0 : index
    %c0_10 = arith.constant 0 : index
    %10 = vector.load %arg5[%c0_9, %c0_10] : memref<1x4xf32, #tpu.memory_space<vmem>>, vector<1x4xf32>
    %11 = vector.broadcast %10 : vector<1x4xf32> to vector<8x4xf32>
    %12 = arith.addf %9, %11 : vector<8x4xf32>
    %c0_11 = arith.constant 0 : index
    %c0_12 = arith.constant 0 : index
    %13 = vector.load %arg6[%c0_11, %c0_12] : memref<8x4xf32, #tpu.memory_space<vmem>>, vector<8x4xf32>
    tpu.vector_store %arg6[%c0_11, %c0_12], %12 {strides = array<i32>} : memref<8x4xf32, #tpu.memory_space<vmem>>, vector<8x4xf32>,
    return
  }
  func.func @transform_0(%arg0: i32) -> (i32, i32) {
    %c0_i32 = arith.constant 0 : i32
    %c0_i32_0 = arith.constant 0 : i32
    return %arg0, %c0_i32 : i32, i32
  }
  func.func @transform_1(%arg0: i32) -> (i32, i32) {
    %c0_i32 = arith.constant 0 : i32
    %c0_i32_0 = arith.constant 0 : i32
    %c0_i32_1 = arith.constant 0 : i32
    return %c0_i32, %c0_i32_0 : i32, i32
  }
  func.func @transform_2(%arg0: i32) -> (i32, i32) {
    %c0_i32 = arith.constant 0 : i32
    %c0_i32_0 = arith.constant 0 : i32
    %c0_i32_1 = arith.constant 0 : i32
    return %c0_i32, %c0_i32_0 : i32, i32
  }
  func.func @transform_3(%arg0: i32) -> (i32, i32) {
    %c0_i32 = arith.constant 0 : i32
    %c0_i32_0 = arith.constant 0 : i32
    %c0_i32_1 = arith.constant 0 : i32
    return %c0_i32, %c0_i32_0 : i32, i32
  }
  func.func @transform_4(%arg0: i32) -> (i32, i32) {
    %c0_i32 = arith.constant 0 : i32
    %c0_i32_0 = arith.constant 0 : i32
    %c0_i32_1 = arith.constant 0 : i32
    return %c0_i32, %c0_i32_0 : i32, i32
  }
  func.func @transform_5(%arg0: i32) -> (i32, i32) {
    %c0_i32 = arith.constant 0 : i32
    %c0_i32_0 = arith.constant 0 : i32
    return %arg0, %c0_i32 : i32, i32
  }
}

</mosaic_0001>

<llo_original>
// kernel: dqn_forward.1
$region0: #{dqn_forward.1}
  #allocation0 [shape = 'u32[]', space=smem, size = 0x4, offset = 0x4, fixed_abs, tag = 'smem constant byte address 0x4 - core index']
  #allocation1 [shape = 'u32[72,128]{1,0:T(1,128)}', space=vmem, size = 0x9000, scoped, tag = 'internal scratch']
  %s0 = inlined_call_operand.vmem [shape: f32[8,16], index: 0, kind: input, shape index: {}]
  %s1 = inlined_call_operand.vmem [shape: f32[16,128], index: 1, kind: input, shape index: {}]
  %s2 = inlined_call_operand.vmem [shape: f32[1,128], index: 2, kind: input, shape index: {}]
  %s3 = inlined_call_operand.vmem [shape: f32[128,4], index: 3, kind: input, shape index: {}]
  %s4 = inlined_call_operand.vmem [shape: f32[1,4], index: 4, kind: input, shape index: {}]
  %s5 = inlined_call_operand.vmem [shape: f32[8,4], index: 5, kind: output, shape index: {}]
  %s6 = sld [smem:[#allocation0]]
  $region30: #{dqn_forward.1} parent=0
    _
  %s8 = ssub.s32 1, %s6
  %s9 = scalar_select 0, %s8, %s6
  // Predicated region
  $region2: #{dqn_forward.1} parent=0 // pred_check
    _
  $region3: #{dqn_forward.1} parent=0 // pred_check_branch
    %11 = sbr.rel (0) target = $region5
  $region4: #{dqn_forward.1} parent=0 // pred_region
    _
  $region5: #{dqn_forward.1} parent=0 // pred_fallthru
    _
  // Predicated region
  $region6: #{dqn_forward.1} parent=0 // pred_check
    _
  $region7: #{dqn_forward.1} parent=0 // pred_check_branch
    %13 = sbr.rel (0) target = $region9
  $region8: #{dqn_forward.1} parent=0 // pred_region
    _
  $region9: #{dqn_forward.1} parent=0 // pred_fallthru
    _
  // Predicated region
  $region10: #{dqn_forward.1} parent=0 // pred_check
    _
  $region11: #{dqn_forward.1} parent=0 // pred_check_branch
    %15 = sbr.rel (0) target = $region13
  $region12: #{dqn_forward.1} parent=0 // pred_region
    _
  $region13: #{dqn_forward.1} parent=0 // pred_fallthru
    _
  // Predicated region
  $region14: #{dqn_forward.1} parent=0 // pred_check
    _
  $region15: #{dqn_forward.1} parent=0 // pred_check_branch
    %17 = sbr.rel (0) target = $region17
  $region16: #{dqn_forward.1} parent=0 // pred_region
    _
  $region17: #{dqn_forward.1} parent=0 // pred_fallthru
    _
  // Predicated region
  $region18: #{dqn_forward.1} parent=0 // pred_check
    _
  $region19: #{dqn_forward.1} parent=0 // pred_check_branch
    %19 = sbr.rel (0) target = $region21
  $region20: #{dqn_forward.1} parent=0 // pred_region
    _
  $region21: #{dqn_forward.1} parent=0 // pred_fallthru
    _
  %v20 = vld [vmem:[%s0] sm:$0xff]
  %v21 = vld [vmem:[%s1] sm:$0xff]
  %v22 = vld [vmem:[%s1 + $0x8] sm:$0xff]
  %v23 = vld [vmem:[%s2] sm:$0x1]
  %v25 = vperm.slane %v23, 0
  %vm27 = vcmask 130048
  %v29 = vsel %vm27, %v20, 0
  %31 = vmatpush.msra.mxu0 0.0
  %32 = vmatpush.msra.mxu0 0.0
  %33 = vmatpush.msra.mxu0 0.0
  %34 = vmatpush.msra.mxu0 0.0
  %35 = vmatpush.msra.mxu0 0.0
  %36 = vmatpush.msra.mxu0 0.0
  %37 = vmatpush.msra.mxu0 0.0
  %38 = vmatpush.msra.mxu0 0.0
  %39 = vmatpush.msra.mxu0 0.0
  %40 = vmatpush.msra.mxu0 0.0
  %41 = vmatpush.msra.mxu0 0.0
  %42 = vmatpush.msra.mxu0 0.0
  %43 = vmatpush.msra.mxu0 0.0
  %44 = vmatpush.msra.mxu0 0.0
  %45 = vmatpush.msra.mxu0 %v22
  %46 = vmatpush.msra.mxu0 %v21
  %47 = vmatmul.f32.gmra.mxu0 %v29
  %v48 = vpop.f32.mrf.mxu0
  %v49 = vadd.f32 %v25, %v48
  %50 = vdwg.mxu0
  %v51 = vmax.f32 %v49, 0.0
  %v52 = vld [vmem:[%s3] sm:$0xff]
  %v53 = vld [vmem:[%s3 + $0x8] sm:$0xff]
  %v54 = vld [vmem:[%s3 + $0x10] sm:$0xff]
  %v55 = vld [vmem:[%s3 + $0x18] sm:$0xff]
  %v56 = vld [vmem:[%s3 + $0x20] sm:$0xff]
  %v57 = vld [vmem:[%s3 + $0x28] sm:$0xff]
  %v58 = vld [vmem:[%s3 + $0x30] sm:$0xff]
  %v59 = vld [vmem:[%s3 + $0x38] sm:$0xff]
  %v60 = vld [vmem:[%s3 + $0x40] sm:$0xff]
  %v61 = vld [vmem:[%s3 + $0x48] sm:$0xff]
  %v62 = vld [vmem:[%s3 + $0x50] sm:$0xff]
  %v63 = vld [vmem:[%s3 + $0x58] sm:$0xff]
  %v64 = vld [vmem:[%s3 + $0x60] sm:$0xff]
  %v65 = vld [vmem:[%s3 + $0x68] sm:$0xff]
  %v66 = vld [vmem:[%s3 + $0x70] sm:$0xff]
  %v67 = vld [vmem:[%s3 + $0x78] sm:$0xff]
  %v68 = vld [vmem:[%s4] sm:$0x1]
  %v70 = vperm.slane %v68, 0
  %72 = vmatpush.msra.mxu0 %v67
  %73 = vmatpush.msra.mxu0 %v66
  %74 = vmatpush.msra.mxu0 %v65
  %75 = vmatpush.msra.mxu0 %v64
  %76 = vmatpush.msra.mxu0 %v63
  %77 = vmatpush.msra.mxu0 %v62
  %78 = vmatpush.msra.mxu0 %v61
  %79 = vmatpush.msra.mxu0 %v60
  %80 = vmatpush.msra.mxu0 %v59
  %81 = vmatpush.msra.mxu0 %v58
  %82 = vmatpush.msra.mxu0 %v57
  %83 = vmatpush.msra.mxu0 %v56
  %84 = vmatpush.msra.mxu0 %v55
  %85 = vmatpush.msra.mxu0 %v54
  %86 = vmatpush.msra.mxu0 %v53
  %87 = vmatpush.msra.mxu0 %v52
  %88 = vmatmul.f32.gmra.mxu0 %v51
  %v89 = vpop.f32.mrf.mxu0
  %v90 = vadd.f32 %v70, %v89
  %91 = vdwg.mxu0
  %vm92 = vcmask 31744
  %93 = vst.msk [vmem:[%s5] sm:$0xff] %vm92, %v90
  // Predicated region
  $region22: #{dqn_forward.1} parent=0 // pred_check
    _
  $region23: #{dqn_forward.1} parent=0 // pred_check_branch
    %95 = sbr.rel (0) target = $region25
  $region24: #{dqn_forward.1} parent=0 // pred_region
    _
  $region25: #{dqn_forward.1} parent=0 // pred_fallthru
    _
  // Predicated region
  $region26: #{dqn_forward.1} parent=0 // pred_check
    _
  $region27: #{dqn_forward.1} parent=0 // pred_check_branch
    %97 = sbr.rel (0) target = $region29
  $region28: #{dqn_forward.1} parent=0 // pred_region
    _
  $region29: #{dqn_forward.1} parent=0 // pred_fallthru
    _

</llo_original>
